<compile_context>
chip_gen: v5e
topology: v5e:2x2
jax: 0.10.0
libtpu: 0.0.40
codegen_flags: <defaults>
</compile_context>

<pallas_src>
import jax
import jax.numpy as jnp
from jax.experimental import pallas as pl
from jax.experimental.pallas import tpu as pltpu
from jax.scipy.linalg import block_diag


def _round_up(n, m):
    return ((n + m - 1) // m) * m


def tower_vae_kernel(x_ref, wc_ref, bc_ref, w2_ref, b2_ref, out_ref):
    # x_ref:  (tb, dim_emb)      f32  -- concat(x_emb, pretrain) tile
    # wc_ref: (dim_emb, H*d1)    bf16 -- Wmu @ W1_fused (fc_mu folded in)
    # bc_ref: (1, H*d1)          f32  -- bmu @ W1_fused + b1_fused
    # w2_ref: (H*d1, pad_out)    bf16 -- block-diagonal W2, zero-padded lanes
    # b2_ref: (1, pad_out)       f32
    # out_ref:(tb, pad_out)      f32  -- lane-dense (128-lane) store
    x = x_ref[...].astype(jnp.bfloat16)          # in-kernel cast (hidden on VPU)

    # Layer 0 (all heads fused, fc_mu folded): (tb, dim_emb) @ (dim_emb, H*d1).
    h1 = jnp.dot(x, wc_ref[...], preferred_element_type=jnp.float32)
    h1 = jnp.maximum(h1 + bc_ref[...], 0.0)      # ReLU (Dropout p=0 -> identity)

    # Layer 1 (all heads via block-diagonal W2): (tb, H*d1) @ (H*d1, pad_out).
    h2 = jnp.dot(h1.astype(jnp.bfloat16), w2_ref[...],
                 preferred_element_type=jnp.float32)
    out_ref[...] = jnp.maximum(h2 + b2_ref[...], 0.0)


def prepare_params(params):
    """One-time fusion/fold of the TowerVAE parameters (hoisted out of the
    forward path). nn.Linear weights are stored transposed: (in, out)."""
    wmu = params["wmu"].astype(jnp.float32)       # (dim_emb, dim_z)
    bmu = params["bmu"].astype(jnp.float32)       # (1, dim_z)
    w1, b1 = params["w1"], params["b1"]           # (H, dim_z, d1), (H, 1, d1)
    w2, b2 = params["w2"], params["b2"]           # (H, d1, d2),    (H, 1, d2)
    num_heads, dim_z, d1 = w1.shape
    d2 = w2.shape[-1]
    fused_out = num_heads * d2
    pad_out = _round_up(fused_out, 128)           # lane-dense output slab

    # Fuse layer-0 weights of all heads: column block h = W1[h].
    w1_f = jnp.transpose(w1, (1, 0, 2)).reshape(dim_z, num_heads * d1)
    w1_f = w1_f.astype(jnp.float32)
    b1_f = b1.reshape(1, num_heads * d1).astype(jnp.float32)

    # Fold fc_mu into layer 0 (exact, done in f32, single bf16 cast).
    w_comb = (wmu @ w1_f).astype(jnp.bfloat16)    # (dim_emb, H*d1)
    b_comb = (bmu @ w1_f + b1_f)                  # (1, H*d1) f32

    # Layer-1 as a block-diagonal matrix, zero-padded to a 128-lane multiple.
    w2_bd = block_diag(*[w2[h] for h in range(num_heads)])   # (H*d1, H*d2)
    w2_bd = jnp.pad(w2_bd, ((0, 0), (0, pad_out - fused_out)))
    w2_bd = w2_bd.astype(jnp.bfloat16)
    b2_f = jnp.pad(b2.reshape(1, fused_out),
                   ((0, 0), (0, pad_out - fused_out))).astype(jnp.float32)

    return {
        "w_comb": w_comb, "b_comb": b_comb, "w2_bd": w2_bd, "b2": b2_f,
        "num_heads": int(num_heads), "d2": int(d2),
        "fused_out": int(fused_out), "pad_out": int(pad_out),
    }


def tower_vae_forward(x_emb, pretrain_embeddings, fused, *, tile_b=512):
    """Mirrors TowerVAE.forward(x, pretrain_embeddings) using pre-fused params."""
    # Returned dnn_input is the plain f32 concat (exactly as in the module);
    # it is also the kernel's single activation input (bf16 cast is in-kernel).
    dnn_input = jnp.concatenate([x_emb, pretrain_embeddings], axis=1)
    B, dim_emb = dnn_input.shape

    w_comb, b_comb = fused["w_comb"], fused["b_comb"]
    w2_bd, b2 = fused["w2_bd"], fused["b2"]
    num_heads, d2 = fused["num_heads"], fused["d2"]
    fused_out, pad_out = fused["fused_out"], fused["pad_out"]
    hd1 = w_comb.shape[1]

    # Batch tile: large multiple of 8 sublanes; single step for tiny batches.
    tb = min(_round_up(B, 8), tile_b)
    b_pad = _round_up(B, tb)
    x = dnn_input if b_pad == B else jnp.pad(dnn_input,
                                             ((0, b_pad - B), (0, 0)))

    out_padded = pl.pallas_call(
        tower_vae_kernel,
        out_shape=jax.ShapeDtypeStruct((b_pad, pad_out), jnp.float32),
        grid_spec=pltpu.PrefetchScalarGridSpec(
            num_scalar_prefetch=0,
            grid=(b_pad // tb,),
            in_specs=[
                pl.BlockSpec((tb, dim_emb), lambda i: (i, 0)),       # x tile
                pl.BlockSpec((dim_emb, hd1), lambda i: (0, 0)),      # W_comb
                pl.BlockSpec((1, hd1), lambda i: (0, 0)),            # b_comb
                pl.BlockSpec((hd1, pad_out), lambda i: (0, 0)),      # W2 blkdiag
                pl.BlockSpec((1, pad_out), lambda i: (0, 0)),        # b2
            ],
            out_specs=pl.BlockSpec((tb, pad_out), lambda i: (i, 0)),
        ),
        compiler_params=pltpu.CompilerParams(
            dimension_semantics=("parallel",)),
    )(x, w_comb, b_comb, w2_bd, b2)

    results = out_padded[:B, :fused_out].reshape(B, num_heads, d2)
    return results, dnn_input


def make_params(key, dim_emb, dim_z, dnn_size, output):
    """Deterministic synthetic parameters matching TowerVAE.__init__ shapes
    (nn.Linear weights are (out, in); we store the transposed (in, out))."""
    d1, d2 = dnn_size
    ks = jax.random.split(key, 6)
    scale = 0.05
    return {
        "wmu": scale * jax.random.normal(ks[0], (dim_emb, dim_z), jnp.float32),
        "bmu": scale * jax.random.normal(ks[1], (1, dim_z), jnp.float32),
        "w1": scale * jax.random.normal(ks[2], (output, dim_z, d1), jnp.float32),
        "b1": scale * jax.random.normal(ks[3], (output, 1, d1), jnp.float32),
        "w2": scale * jax.random.normal(ks[4], (output, d1, d2), jnp.float32),
        "b2": scale * jax.random.normal(ks[5], (output, 1, d2), jnp.float32),
    }


def reference_forward(x_emb, pretrain_embeddings, params):
    """Pure-JAX f32 reference of TowerVAE.forward."""
    dnn_input = jnp.concatenate([x_emb, pretrain_embeddings], axis=1)
    z_mu = dnn_input @ params["wmu"] + params["bmu"]
    outs = []
    for o in range(params["w1"].shape[0]):
        h1 = jnp.maximum(z_mu @ params["w1"][o] + params["b1"][o], 0.0)
        h2 = jnp.maximum(h1 @ params["w2"][o] + params["b2"][o], 0.0)
        outs.append(h2)
    return jnp.stack(outs, axis=1), dnn_input


if __name__ == "__main__":
    key = jax.random.PRNGKey(0)
    k_x, k_p, k_w = jax.random.split(key, 3)

    # Small shapes consistent with the module:
    batch = 8
    emb_width = 32           # EmbeddingModule dense output width
    pretrain_width = 16      # pretrain_embeddings width
    dim_emb = emb_width + pretrain_width
    dim_z = 64
    dnn_size = (64, 32)
    output = 2               # number of DNN heads -> results: (B, output, 32)

    x_emb = jax.random.normal(k_x, (batch, emb_width), jnp.float32)
    pretrain = jax.random.normal(k_p, (batch, pretrain_width), jnp.float32)
    params = make_params(k_w, dim_emb, dim_z, dnn_size, output)

    # One-time weight fusion / fc_mu fold (out of the forward path).
    fused = jax.tree_util.tree_map(
        lambda a: a, prepare_params(params))
    jax.block_until_ready(fused["w_comb"])

    results, dnn_input = tower_vae_forward(x_emb, pretrain, fused)
    jax.block_until_ready(results)
    jax.block_until_ready(dnn_input)

    ref_results, ref_input = reference_forward(x_emb, pretrain, params)
    assert results.shape == (batch, output, dnn_size[-1])
    assert dnn_input.shape == (batch, dim_emb)
    # bf16 MXU operands with f32 accumulation -> loose tolerance vs f32 ref.
    assert jnp.allclose(results, ref_results, atol=2e-2, rtol=2e-2), (
        float(jnp.max(jnp.abs(results - ref_results))))
    assert jnp.allclose(dnn_input, ref_input)

    print("KERNEL_OK")
</pallas_src>

<mosaic_0001>
module attributes {stable_mosaic.version = 11 : i64} {
  func.func @tower_vae_kernel(%arg0: i32, %arg1: memref<8x48xf32, #tpu.memory_space<vmem>>, %arg2: memref<48x128xbf16, #tpu.memory_space<vmem>>, %arg3: memref<1x128xf32, #tpu.memory_space<vmem>>, %arg4: memref<128x128xbf16, #tpu.memory_space<vmem>>, %arg5: memref<1x128xf32, #tpu.memory_space<vmem>>, %arg6: memref<8x128xf32, #tpu.memory_space<vmem>>) attributes {dimension_semantics = [#tpu.dimension_semantics<parallel>], iteration_bounds = array<i64: 1>, scalar_prefetch = 0 : i64, scratch_operands = 0 : i64, tpu.core_type = #tpu.core_type<tc>, window_params = [{transform_indices = @transform_0, window_bounds = array<i64: 8, 48>}, {pipeline_mode = #tpu.pipeline_mode<synchronous>, transform_indices = @transform_1, window_bounds = array<i64: 48, 128>}, {pipeline_mode = #tpu.pipeline_mode<synchronous>, transform_indices = @transform_2, window_bounds = array<i64: 1, 128>}, {pipeline_mode = #tpu.pipeline_mode<synchronous>, transform_indices = @transform_3, window_bounds = array<i64: 128, 128>}, {pipeline_mode = #tpu.pipeline_mode<synchronous>, transform_indices = @transform_4, window_bounds = array<i64: 1, 128>}, {transform_indices = @transform_5, window_bounds = array<i64: 8, 128>}]} {
    %c0 = arith.constant 0 : index
    %c0_0 = arith.constant 0 : index
    %0 = vector.load %arg1[%c0, %c0_0] : memref<8x48xf32, #tpu.memory_space<vmem>>, vector<8x48xf32>
    %1 = arith.truncf %0 : vector<8x48xf32> to vector<8x48xbf16>
    %c0_1 = arith.constant 0 : index
    %c0_2 = arith.constant 0 : index
    %2 = vector.load %arg2[%c0_1, %c0_2] : memref<48x128xbf16, #tpu.memory_space<vmem>>, vector<48x128xbf16>
    %cst = arith.constant dense<0.000000e+00> : vector<8x128xf32>
    %3 = tpu.matmul %1, %2, %cst {dimension_numbers = #tpu.dot_dimension_numbers<[1], [0], [0], [1], [0, 0, 1, 1], [], []>} : vector<8x48xbf16>, vector<48x128xbf16>, vector<8x128xf32> -> vector<8x128xf32>
    %c0_3 = arith.constant 0 : index
    %c0_4 = arith.constant 0 : index
    %4 = vector.load %arg3[%c0_3, %c0_4] : memref<1x128xf32, #tpu.memory_space<vmem>>, vector<1x128xf32>
    %5 = vector.broadcast %4 : vector<1x128xf32> to vector<8x128xf32>
    %6 = arith.addf %3, %5 : vector<8x128xf32>
    %cst_5 = arith.constant 0.000000e+00 : f32
    %7 = vector.broadcast %cst_5 : f32 to vector<8x128xf32>
    %8 = arith.maximumf %6, %7 : vector<8x128xf32>
    %9 = arith.truncf %8 : vector<8x128xf32> to vector<8x128xbf16>
    %c0_6 = arith.constant 0 : index
    %c0_7 = arith.constant 0 : index
    %10 = vector.load %arg4[%c0_6, %c0_7] : memref<128x128xbf16, #tpu.memory_space<vmem>>, vector<128x128xbf16>
    %cst_8 = arith.constant dense<0.000000e+00> : vector<8x128xf32>
    %11 = tpu.matmul %9, %10, %cst_8 {dimension_numbers = #tpu.dot_dimension_numbers<[1], [0], [0], [1], [0, 0, 1, 1], [], []>} : vector<8x128xbf16>, vector<128x128xbf16>, vector<8x128xf32> -> vector<8x128xf32>
    %c0_9 = arith.constant 0 : index
    %c0_10 = arith.constant 0 : index
    %12 = vector.load %arg5[%c0_9, %c0_10] : memref<1x128xf32, #tpu.memory_space<vmem>>, vector<1x128xf32>
    %13 = vector.broadcast %12 : vector<1x128xf32> to vector<8x128xf32>
    %14 = arith.addf %11, %13 : vector<8x128xf32>
    %cst_11 = arith.constant 0.000000e+00 : f32
    %15 = vector.broadcast %cst_11 : f32 to vector<8x128xf32>
    %16 = arith.maximumf %14, %15 : vector<8x128xf32>
    %c0_12 = arith.constant 0 : index
    %c0_13 = arith.constant 0 : index
    %17 = vector.load %arg6[%c0_12, %c0_13] : memref<8x128xf32, #tpu.memory_space<vmem>>, vector<8x128xf32>
    tpu.vector_store %arg6[%c0_12, %c0_13], %16 {strides = array<i32>} : memref<8x128xf32, #tpu.memory_space<vmem>>, vector<8x128xf32>,
    return
  }
  func.func @transform_0(%arg0: i32) -> (i32, i32) {
    %c0_i32 = arith.constant 0 : i32
    %c0_i32_0 = arith.constant 0 : i32
    return %arg0, %c0_i32 : i32, i32
  }
  func.func @transform_1(%arg0: i32) -> (i32, i32) {
    %c0_i32 = arith.constant 0 : i32
    %c0_i32_0 = arith.constant 0 : i32
    %c0_i32_1 = arith.constant 0 : i32
    return %c0_i32, %c0_i32_0 : i32, i32
  }
  func.func @transform_2(%arg0: i32) -> (i32, i32) {
    %c0_i32 = arith.constant 0 : i32
    %c0_i32_0 = arith.constant 0 : i32
    %c0_i32_1 = arith.constant 0 : i32
    return %c0_i32, %c0_i32_0 : i32, i32
  }
  func.func @transform_3(%arg0: i32) -> (i32, i32) {
    %c0_i32 = arith.constant 0 : i32
    %c0_i32_0 = arith.constant 0 : i32
    %c0_i32_1 = arith.constant 0 : i32
    return %c0_i32, %c0_i32_0 : i32, i32
  }
  func.func @transform_4(%arg0: i32) -> (i32, i32) {
    %c0_i32 = arith.constant 0 : i32
    %c0_i32_0 = arith.constant 0 : i32
    %c0_i32_1 = arith.constant 0 : i32
    return %c0_i32, %c0_i32_0 : i32, i32
  }
  func.func @transform_5(%arg0: i32) -> (i32, i32) {
    %c0_i32 = arith.constant 0 : i32
    %c0_i32_0 = arith.constant 0 : i32
    return %arg0, %c0_i32 : i32, i32
  }
}

</mosaic_0001>

<llo_original>
// kernel: tpu_custom_call.1
$region0: #{tpu_custom_call.1}
  #allocation0 [shape = 'u32[]', space=smem, size = 0x4, offset = 0x4, fixed_abs, tag = 'smem constant byte address 0x4 - core index']
  #allocation1 [shape = 'u32[72,128]{1,0:T(1,128)}', space=vmem, size = 0x9000, scoped, tag = 'internal scratch']
  %s0 = inlined_call_operand.hbm [shape: f32[8,48], index: 0, kind: input, shape index: {}]
  %s1 = inlined_call_operand.hbm [shape: bf16[48,128], index: 1, kind: input, shape index: {}]
  %s2 = inlined_call_operand.vmem [shape: f32[1,128], index: 2, kind: input, shape index: {}]
  %s3 = inlined_call_operand.hbm [shape: bf16[128,128], index: 3, kind: input, shape index: {}]
  %s4 = inlined_call_operand.vmem [shape: f32[1,128], index: 4, kind: input, shape index: {}]
  %s5 = inlined_call_operand.hbm [shape: f32[8,128], index: 5, kind: output, shape index: {}]
  %s6 = sld [smem:[#allocation0]]
  $region42: #{tpu_custom_call.1} parent=0
    _
  %s8 = ssub.s32 1, %s6
  %s9 = scalar_select 0, %s8, %s6
  $region1: #{tpu_custom_call.1} parent=0
    #allocation2 [shape = 'u8[4096]{0}', space=vmem, size = 0x1000, scoped, tag = 'input window, operand 0, single buffered']
    #allocation3 [shape = 's32[1]{0}', space=sflag, size = 0x4, scoped, tag = 'scoped memory for tpu_custom_call.1']
    #allocation4 [shape = 's32[1]{0}', space=sflag, size = 0x4, scoped, tag = 'scoped memory for tpu_custom_call.1']
    #allocation5 [shape = 'u8[12288]{0}', space=vmem, size = 0x3000, scoped, tag = 'input window, operand 1, single buffered']
    #allocation6 [shape = 's32[1]{0}', space=sflag, size = 0x4, scoped, tag = 'scoped memory for tpu_custom_call.1']
    #allocation7 [shape = 'u8[32768]{0}', space=vmem, size = 0x8000, scoped, tag = 'input window, operand 3, single buffered']
    #allocation8 [shape = 'u8[4096]{0}', space=vmem, size = 0x1000, scoped, tag = 'output window, operand 0, single buffered']
    %10 = vsyncpa [#allocation3], 0
    %11 = vsyncpa [#allocation6], 0
    %12 = vsyncpa [#allocation4], 0
    // Predicated region
    $region2: #{tpu_custom_call.1} parent=1 // pred_check
      _
    $region3: #{tpu_custom_call.1} parent=1 // pred_check_branch
      %14 = sbr.rel (0) target = $region5
    $region4: #{tpu_custom_call.1} parent=1 // pred_region
      %16 = vsyncadd [#allocation3], 0
      %s18 = sshll.u32 %s0, 4
      %s19 = int_to_ptr.hbm [resolvable:$true] %s18
      %s20 = sshll.u32 [#allocation2], 4
      %s21 = int_to_ptr.vmem [resolvable:$true] %s20
      %23 = dma.hbm_to_vmem [thread:$0]  %s19, 128, %s21, [#allocation3]
    $region5: #{tpu_custom_call.1} parent=1 // pred_fallthru
      _
    // Predicated region
    $region6: #{tpu_custom_call.1} parent=1 // pred_check
      _
    $region7: #{tpu_custom_call.1} parent=1 // pred_check_branch
      %25 = sbr.rel (0) target = $region9
    $region8: #{tpu_custom_call.1} parent=1 // pred_region
      %27 = vsyncadd [#allocation6], 0
      %s28 = sshll.u32 %s1, 4
      %s29 = int_to_ptr.hbm [resolvable:$true] %s28
      %s30 = sshll.u32 [#allocation5], 4
      %s31 = int_to_ptr.vmem [resolvable:$true] %s30
      %36 = dma.hbm_to_vmem [thread:$0]  %s29, 384, %s31, [#allocation6], 64, 64, 4
    $region9: #{tpu_custom_call.1} parent=1 // pred_fallthru
      _
    // Predicated region
    $region10: #{tpu_custom_call.1} parent=1 // pred_check
      _
    $region11: #{tpu_custom_call.1} parent=1 // pred_check_branch
      %38 = sbr.rel (0) target = $region13
    $region12: #{tpu_custom_call.1} parent=1 // pred_region
      _
    $region13: #{tpu_custom_call.1} parent=1 // pred_fallthru
      _
    // Predicated region
    $region14: #{tpu_custom_call.1} parent=1 // pred_check
      _
    $region15: #{tpu_custom_call.1} parent=1 // pred_check_branch
      %40 = sbr.rel (0) target = $region17
    $region16: #{tpu_custom_call.1} parent=1 // pred_region
      %42 = vsyncadd [#allocation6], 0
      %s43 = sshll.u32 %s3, 4
      %s44 = int_to_ptr.hbm [resolvable:$true] %s43
      %s45 = sshll.u32 [#allocation7], 4
      %s46 = int_to_ptr.vmem [resolvable:$true] %s45
      %51 = dma.hbm_to_vmem [thread:$0]  %s44, 1024, %s46, [#allocation6], 64, 64, 4
    $region17: #{tpu_custom_call.1} parent=1 // pred_fallthru
      _
    // Predicated region
    $region18: #{tpu_custom_call.1} parent=1 // pred_check
      _
    $region19: #{tpu_custom_call.1} parent=1 // pred_check_branch
      %53 = sbr.rel (0) target = $region21
    $region20: #{tpu_custom_call.1} parent=1 // pred_region
      _
    $region21: #{tpu_custom_call.1} parent=1 // pred_fallthru
      _
    // Predicated region
    $region22: #{tpu_custom_call.1} parent=1 // pred_check
      _
    $region23: #{tpu_custom_call.1} parent=1 // pred_check_branch
      %55 = sbr.rel (0) target = $region25
    $region24: #{tpu_custom_call.1} parent=1 // pred_region
      %57 = dma.done [#allocation3], 128
    $region25: #{tpu_custom_call.1} parent=1 // pred_fallthru
      _
    // Predicated region
    $region26: #{tpu_custom_call.1} parent=1 // pred_check
      _
    $region27: #{tpu_custom_call.1} parent=1 // pred_check_branch
      %59 = sbr.rel (0) target = $region29
    $region28: #{tpu_custom_call.1} parent=1 // pred_region
      %61 = dma.done [#allocation6], 384
    $region29: #{tpu_custom_call.1} parent=1 // pred_fallthru
      _
    // Predicated region
    $region30: #{tpu_custom_call.1} parent=1 // pred_check
      _
    $region31: #{tpu_custom_call.1} parent=1 // pred_check_branch
      %63 = sbr.rel (0) target = $region33
    $region32: #{tpu_custom_call.1} parent=1 // pred_region
      %65 = dma.done [#allocation6], 1024
    $region33: #{tpu_custom_call.1} parent=1 // pred_fallthru
      _
    %v67 = vld [vmem:[#allocation2] sm:$0xff]
    %v68 = vpack.c.bf16 %v67, %v67
    %v69 = vld [vmem:[#allocation5] sm:$0xf]
    %v70 = vld [vmem:[#allocation5 + $0x4] sm:$0xf]
    %v71 = vld [vmem:[#allocation5 + $0x8] sm:$0xf]
    %v72 = vld [vmem:[#allocation5 + $0xc] sm:$0xf]
    %v73 = vld [vmem:[#allocation5 + $0x10] sm:$0xf]
    %v74 = vld [vmem:[#allocation5 + $0x14] sm:$0xf]
    %v75 = vld [vmem:[%s2] sm:$0x1]
    %v77 = vperm.slane %v75, 0
    %v85 = vunpack.c.l.b16 %v69
    %v86 = vunpack.c.l.b16 %v70
    %v87 = vunpack.c.l.b16 %v71
    %v88 = vunpack.c.l.b16 %v72
    %v89 = vunpack.c.l.b16 %v73
    %v90 = vunpack.c.l.b16 %v74
    %v91 = vpack.c.b16 %v86, %v85
    %v92 = vpack.c.b16 %v88, %v87
    %v93 = vpack.c.b16 %v90, %v89
    %vm97 = vcmask 392192
    %v99 = vsel %vm97, %v68, 0
    %101 = vmatpush.bf16.msra.mxu0 0
    %102 = vmatpush.bf16.msra.mxu0 0
    %103 = vmatpush.bf16.msra.mxu0 0
    %104 = vmatpush.bf16.msra.mxu0 0
    %105 = vmatpush.bf16.msra.mxu0 0
    %106 = vmatpush.bf16.msra.mxu0 %v93
    %107 = vmatpush.bf16.msra.mxu0 %v92
    %108 = vmatpush.bf16.msra.mxu0 %v91
    %109 = vmatmul.bf16.gmra.mxu0 %v99
    %v110 = vpop.f32.mrf.mxu0
    %v111 = vadd.f32 %v77, %v110
    %v112 = vpop.f32.mrf.mxu0
    %113 = vdwg.mxu0
    %v114 = vmax.f32 %v111, 0.0
    %v115 = vpack.c.bf16 %v114, %v114
    %v116 = vld [vmem:[#allocation7] sm:$0xf]
    %v117 = vld [vmem:[#allocation7 + $0x4] sm:$0xf]
    %v118 = vld [vmem:[#allocation7 + $0x8] sm:$0xf]
    %v119 = vld [vmem:[#allocation7 + $0xc] sm:$0xf]
    %v120 = vld [vmem:[#allocation7 + $0x10] sm:$0xf]
    %v121 = vld [vmem:[#allocation7 + $0x14] sm:$0xf]
    %v122 = vld [vmem:[#allocation7 + $0x18] sm:$0xf]
    %v123 = vld [vmem:[#allocation7 + $0x1c] sm:$0xf]
    %v124 = vld [vmem:[#allocation7 + $0x20] sm:$0xf]
    %v125 = vld [vmem:[#allocation7 + $0x24] sm:$0xf]
    %v126 = vld [vmem:[#allocation7 + $0x28] sm:$0xf]
    %v127 = vld [vmem:[#allocation7 + $0x2c] sm:$0xf]
    %v128 = vld [vmem:[#allocation7 + $0x30] sm:$0xf]
    %v129 = vld [vmem:[#allocation7 + $0x34] sm:$0xf]
    %v130 = vld [vmem:[#allocation7 + $0x38] sm:$0xf]
    %v131 = vld [vmem:[#allocation7 + $0x3c] sm:$0xf]
    %v132 = vld [vmem:[%s4] sm:$0x1]
    %v134 = vperm.slane %v132, 0
    %v152 = vunpack.c.l.b16 %v116
    %v153 = vunpack.c.l.b16 %v117
    %v154 = vunpack.c.l.b16 %v118
    %v155 = vunpack.c.l.b16 %v119
    %v156 = vunpack.c.l.b16 %v120
    %v157 = vunpack.c.l.b16 %v121
    %v158 = vunpack.c.l.b16 %v122
    %v159 = vunpack.c.l.b16 %v123
    %v160 = vunpack.c.l.b16 %v124
    %v161 = vunpack.c.l.b16 %v125
    %v162 = vunpack.c.l.b16 %v126
    %v163 = vunpack.c.l.b16 %v127
    %v164 = vunpack.c.l.b16 %v128
    %v165 = vunpack.c.l.b16 %v129
    %v166 = vunpack.c.l.b16 %v130
    %v167 = vunpack.c.l.b16 %v131
    %v168 = vpack.c.b16 %v153, %v152
    %v169 = vpack.c.b16 %v155, %v154
    %v170 = vpack.c.b16 %v157, %v156
    %v171 = vpack.c.b16 %v159, %v158
    %v172 = vpack.c.b16 %v161, %v160
    %v173 = vpack.c.b16 %v163, %v162
    %v174 = vpack.c.b16 %v165, %v164
    %v175 = vpack.c.b16 %v167, %v166
    %184 = vmatpush.bf16.msra.mxu0 %v175
    %185 = vmatpush.bf16.msra.mxu0 %v174
    %186 = vmatpush.bf16.msra.mxu0 %v173
    %187 = vmatpush.bf16.msra.mxu0 %v172
    %188 = vmatpush.bf16.msra.mxu0 %v171
    %189 = vmatpush.bf16.msra.mxu0 %v170
    %190 = vmatpush.bf16.msra.mxu0 %v169
    %191 = vmatpush.bf16.msra.mxu0 %v168
    %192 = vmatmul.bf16.gmra.mxu0 %v115
    %v193 = vpop.f32.mrf.mxu0
    %v194 = vadd.f32 %v134, %v193
    %v195 = vpop.f32.mrf.mxu0
    %196 = vdwg.mxu0
    %v197 = vmax.f32 %v194, 0.0
    %198 = vst [vmem:[#allocation8] sm:$0xff] %v197
    // Predicated region
    $region34: #{tpu_custom_call.1} parent=1 // pred_check
      _
    $region35: #{tpu_custom_call.1} parent=1 // pred_check_branch
      %200 = sbr.rel (0) target = $region37
    $region36: #{tpu_custom_call.1} parent=1 // pred_region
      %202 = vsyncadd [#allocation4], 0
      %s204 = sshll.u32 [#allocation8], 4
      %s205 = int_to_ptr.vmem [resolvable:$true] %s204
      %s206 = sshll.u32 %s5, 4
      %s207 = int_to_ptr.hbm [resolvable:$true] %s206
      %209 = dma.vmem_to_hbm [thread:$0]  %s205, 128, %s207, [#allocation4]
    $region37: #{tpu_custom_call.1} parent=1 // pred_fallthru
      _
    // Predicated region
    $region38: #{tpu_custom_call.1} parent=1 // pred_check
      _
    $region39: #{tpu_custom_call.1} parent=1 // pred_check_branch
      %211 = sbr.rel (0) target = $region41
    $region40: #{tpu_custom_call.1} parent=1 // pred_region
      %213 = dma.done [#allocation4], 128
    $region41: #{tpu_custom_call.1} parent=1 // pred_fallthru
      _
    %214 = vsyncpa [#allocation3], 1
    %215 = vsyncpa [#allocation6], 1
    %216 = vsyncpa [#allocation4], 1

</llo_original>
